<compile_context>
chip_gen: v5e
topology: v5e:2x2
jax: 0.10.0
libtpu: 0.0.40
codegen_flags: <defaults>
</compile_context>

<pallas_src>
import math

import jax
import jax.numpy as jnp
from jax.experimental import pallas as pl
from jax.experimental.pallas import tpu as pltpu

ALPHA = 1.0
GAMMA = 2.0          # implemented as an explicit square below

_LANES = 128
# 32 sublanes x 128 lanes covers the native VMEM tile of every dtype we ship
# (int8: 32, bf16: 16, f32: 8), so any multiple is a legal non-full block.
_ROW_BLOCK = 32 * _LANES            # 4096 rows
_DEFAULT_TILE_ROWS = 65536          # ~<= 48 MiB VMEM incl. temporaries; safe on v5e/v6e/v7x
_VMEM_LIMIT_BYTES = 48 * 1024 * 1024


def _round_up(x, m):
    return -(-x // m) * m


# ---------------------------------------------------------------------------
# Kernel
# ---------------------------------------------------------------------------
def _focal_ce_cfirst(logits_f32, labels_i32):
    """Per-row focal cross entropy, channel-MAJOR layout.

    logits_f32: (C, R, L) float32 -- class on the leading axis so every reduction is
                C-1 pure-VPU ops over dense (R, L) vregs.
    labels_i32: (R, L) int32
    returns   : (R, L) float32
    """
    m = jnp.max(logits_f32, axis=0)                                 # (R, L)
    z = logits_f32 - m                                              # (C, R, L)
    e = jnp.exp(z)                                                  # (C, R, L)   EUP
    s = jnp.sum(e, axis=0)                                          # (R, L)
    cls = jax.lax.broadcasted_iota(jnp.int32, logits_f32.shape, 0)
    z_t = jnp.sum(jnp.where(cls == labels_i32, z, 0.0), axis=0)     # target shifted logit
    ce = jnp.log(s) - z_t                                           # -log softmax(target)
    pt = jnp.exp(-ce)                                               # EUP (no e_t reduce / divide)
    w = 1.0 - pt
    return ALPHA * (w * w) * ce                                     # (1 - pt)**2 * ce


def _fused_core(logit_raw, vel_raw, flab, vlab):
    logit32 = logit_raw.astype(jnp.float32)
    vel32 = vel_raw.astype(jnp.float32)
    cv = vel_raw.shape[0]

    frame_loss = _focal_ce_cfirst(logit32, flab)

    # Velocity head: the module zeroes non-onset logits/labels before the focal loss.
    # Zero logits + label 0 evaluate exactly to the constant below, so compute focal on
    # the RAW velocity logits/labels and select the constant for non-onset rows.
    vel_focal_raw = _focal_ce_cfirst(vel32, vlab)
    onset = jnp.logical_or(flab == 2, flab == 4)
    non_onset_const = float(((1.0 - 1.0 / cv) ** 2) * math.log(cv))
    vel_loss = jnp.where(onset, vel_focal_raw, non_onset_const)
    return frame_loss, vel_loss


def _losses_kernel(logit_ref, vel_ref, flab_ref, vlab_ref, frame_out_ref, vel_out_ref):
    flab = flab_ref[...].astype(jnp.int32)
    vlab = vlab_ref[...].astype(jnp.int32)
    f, v = _fused_core(logit_ref[...], vel_ref[...], flab, vlab)
    frame_out_ref[...] = f
    vel_out_ref[...] = v


def _losses_masked_kernel(logit_ref, vel_ref, flab_ref, vlab_ref, keep_ref,
                          frame_out_ref, vel_out_ref):
    flab = flab_ref[...].astype(jnp.int32)
    vlab = vlab_ref[...].astype(jnp.int32)
    f, v = _fused_core(logit_ref[...], vel_ref[...], flab, vlab)
    keep = keep_ref[...] != 0
    frame_out_ref[...] = jnp.where(keep, f, 0.0)
    vel_out_ref[...] = jnp.where(keep, v, 0.0)


# ---------------------------------------------------------------------------
# Wrapper
# ---------------------------------------------------------------------------
def _pick_tiling(n_rows, tile_rows):
    """Returns (padded_rows, tile_rows_eff)."""
    n128 = _round_up(n_rows, _LANES)
    if n128 <= _ROW_BLOCK:
        return n128, n128           # tiny input: single step, block == whole padded array
    # >= 2 grid steps for non-tiny inputs so ("parallel",) shards rows across v7x's
    # 2 TensorCores (harmless on single-TC v5e/v6e).
    half = _round_up(-(-n_rows // 2), _ROW_BLOCK)
    t = max(_ROW_BLOCK, min(_round_up(tile_rows, _ROW_BLOCK), half))
    return _round_up(n_rows, t), t


def _to_rows_i8(x, n_rows, pad, nr):
    x1 = x.reshape(n_rows).astype(jnp.int8)   # labels / velocity bins < 8, mask is 0/1
    if pad:
        x1 = jnp.pad(x1, (0, pad))
    return x1.reshape(nr, _LANES)


def _run_padded(logit_cf, vel_cf, label_r, vlab_r, keep_r, n_pad, tile_rows_eff):
    cf, cv = logit_cf.shape[0], vel_cf.shape[0]
    nr = n_pad // _LANES
    tr = tile_rows_eff // _LANES
    grid = (n_pad // tile_rows_eff,)

    def cls_spec(c):
        return pl.BlockSpec((c, tr, _LANES), lambda i: (0, i, 0))

    def row_spec():
        return pl.BlockSpec((tr, _LANES), lambda i: (i, 0))

    out_shape = (jax.ShapeDtypeStruct((nr, _LANES), jnp.float32),
                 jax.ShapeDtypeStruct((nr, _LANES), jnp.float32))
    cp = pltpu.CompilerParams(dimension_semantics=("parallel",),
                              vmem_limit_bytes=_VMEM_LIMIT_BYTES)

    if keep_r is None:
        return pl.pallas_call(
            _losses_kernel, out_shape=out_shape, grid=grid,
            in_specs=[cls_spec(cf), cls_spec(cv), row_spec(), row_spec()],
            out_specs=(row_spec(), row_spec()),
            compiler_params=cp,
        )(logit_cf, vel_cf, label_r, vlab_r)
    return pl.pallas_call(
        _losses_masked_kernel, out_shape=out_shape, grid=grid,
        in_specs=[cls_spec(cf), cls_spec(cv), row_spec(), row_spec(), row_spec()],
        out_specs=(row_spec(), row_spec()),
        compiler_params=cp,
    )(logit_cf, vel_cf, label_r, vlab_r, keep_r)


def losses_forward(logit, vel, label, vel_label, mask=None, *, tile_rows=_DEFAULT_TILE_ROWS):
    """logit (B,T,P,Cf) f32/bf16, vel (B,T,P,Cv) f32/bf16, label / vel_label (B,T,P) int,
    optional mask (B,T,P) bool.  Returns (frame_loss, vel_loss), each (B,T,P) f32.

    The channel-first relayout of logit/vel below is the single biggest avoidable HBM
    cost; if the producing projection can emit (C, B, T, P) directly, use
    `losses_forward_channel_first` instead.  Passing bf16 logits/vel halves its cost.
    """
    B, T, P, Cf = logit.shape
    Cv = vel.shape[-1]
    N = B * T * P
    n_pad, tile_rows_eff = _pick_tiling(N, tile_rows)
    nr = n_pad // _LANES
    pad = n_pad - N

    def to_cfirst(x, c):
        x2 = x.reshape(N, c)
        if pad:
            x2 = jnp.pad(x2, ((0, pad), (0, 0)))
        return x2.T.reshape(c, nr, _LANES)

    frame2, vel2 = _run_padded(
        to_cfirst(logit, Cf), to_cfirst(vel, Cv),
        _to_rows_i8(label, N, pad, nr), _to_rows_i8(vel_label, N, pad, nr),
        None if mask is None else _to_rows_i8(jnp.logical_not(mask), N, pad, nr),
        n_pad, tile_rows_eff)

    frame_loss = frame2.reshape(n_pad)[:N].reshape(B, T, P)
    vel_loss = vel2.reshape(n_pad)[:N].reshape(B, T, P)
    return frame_loss, vel_loss


def losses_forward_channel_first(logit_cf, vel_cf, label, vel_label, mask=None, *,
                                 tile_rows=_DEFAULT_TILE_ROWS):
    """Same semantics, but logit_cf is (Cf, B, T, P) and vel_cf is (Cv, B, T, P)
    (channel-major, e.g. emitted directly by the upstream projection) so no host-side
    relayout / extra HBM round-trip is needed."""
    Cf, Cv = logit_cf.shape[0], vel_cf.shape[0]
    out_sh = label.shape
    N = math.prod(out_sh)
    n_pad, tile_rows_eff = _pick_tiling(N, tile_rows)
    nr = n_pad // _LANES
    pad = n_pad - N

    def cf_pad(x, c):
        x2 = x.reshape(c, N)
        if pad:
            x2 = jnp.pad(x2, ((0, 0), (0, pad)))
        return x2.reshape(c, nr, _LANES)

    frame2, vel2 = _run_padded(
        cf_pad(logit_cf, Cf), cf_pad(vel_cf, Cv),
        _to_rows_i8(label, N, pad, nr), _to_rows_i8(vel_label, N, pad, nr),
        None if mask is None else _to_rows_i8(jnp.logical_not(mask), N, pad, nr),
        n_pad, tile_rows_eff)

    frame_loss = frame2.reshape(n_pad)[:N].reshape(out_sh)
    vel_loss = vel2.reshape(n_pad)[:N].reshape(out_sh)
    return frame_loss, vel_loss


# ---------------------------------------------------------------------------
# Reference + self-test
# ---------------------------------------------------------------------------
def _reference(logit, vel, label, vel_label, mask=None):
    """Pure-JAX reference matching the PyTorch semantics."""
    def focal(lg, lb):
        logp = jax.nn.log_softmax(lg.astype(jnp.float32), axis=-1)
        tlogp = jnp.take_along_axis(logp, lb[..., None].astype(jnp.int32), axis=-1)[..., 0]
        ce = -tlogp
        pt = jnp.exp(-ce)
        return ALPHA * (1.0 - pt) ** GAMMA * ce

    frame_loss = focal(logit, label)
    onset = jnp.logical_or(label == 2, label == 4)
    vel_loss = focal(vel * onset[..., None].astype(vel.dtype),
                     vel_label * onset.astype(vel_label.dtype))
    if mask is not None:
        keep = jnp.logical_not(mask).astype(jnp.float32)
        frame_loss = frame_loss * keep
        vel_loss = vel_loss * keep
    return frame_loss, vel_loss


def _check(B, T, P, CF, CV, use_mask, seed, dtype=jnp.float32, channel_first=False,
           atol=1e-5, rtol=1e-5):
    key = jax.random.PRNGKey(seed)
    k1, k2, k3, k4, k5 = jax.random.split(key, 5)
    logit = jax.random.normal(k1, (B, T, P, CF), dtype=jnp.float32).astype(dtype)
    vel = jax.random.normal(k2, (B, T, P, CV), dtype=jnp.float32).astype(dtype)
    label = jax.random.randint(k3, (B, T, P), 0, CF, dtype=jnp.int32)
    vel_label = jax.random.randint(k4, (B, T, P), 0, CV, dtype=jnp.int32)
    mask = jax.random.bernoulli(k5, 0.3, (B, T, P)) if use_mask else None

    if channel_first:
        logit_cf = jnp.moveaxis(logit, -1, 0)   # what an upstream channel-major producer emits
        vel_cf = jnp.moveaxis(vel, -1, 0)
        frame_loss, vel_loss = losses_forward_channel_first(
            logit_cf, vel_cf, label, vel_label, mask=mask)
    else:
        frame_loss, vel_loss = losses_forward(logit, vel, label, vel_label, mask=mask)
    jax.block_until_ready((frame_loss, vel_loss))

    ref_frame, ref_vel = _reference(logit, vel, label, vel_label, mask=mask)
    assert frame_loss.shape == (B, T, P) and vel_loss.shape == (B, T, P)
    assert jnp.allclose(frame_loss, ref_frame, atol=atol, rtol=rtol)
    assert jnp.allclose(vel_loss, ref_vel, atol=atol, rtol=rtol)


if __name__ == "__main__":
    # frame classes (off/offset/onset/sustain/reonset) = 5, velocity bins = 8
    _check(2, 8, 16, 5, 8, use_mask=False, seed=0)                       # single-step, f32
    _check(2, 8, 16, 5, 8, use_mask=True, seed=0)                        # fused keep-mask path
    _check(2, 7, 9, 5, 8, use_mask=True, seed=1)                         # N=126 -> padding path
    _check(2, 40, 64, 5, 8, use_mask=True, seed=2, dtype=jnp.bfloat16,   # multi-step grid, bf16
           atol=2e-5, rtol=2e-5)
    _check(2, 8, 16, 5, 8, use_mask=True, seed=3, channel_first=True)    # no-relayout fast path
    print("KERNEL_OK")
</pallas_src>

<mosaic_0001>
module attributes {stable_mosaic.version = 11 : i64} {
  func.func @_losses_kernel(%arg0: i32, %arg1: memref<5x2x128xf32, #tpu.memory_space<vmem>>, %arg2: memref<8x2x128xf32, #tpu.memory_space<vmem>>, %arg3: memref<2x128xi8, #tpu.memory_space<vmem>>, %arg4: memref<2x128xi8, #tpu.memory_space<vmem>>, %arg5: memref<2x128xf32, #tpu.memory_space<vmem>>, %arg6: memref<2x128xf32, #tpu.memory_space<vmem>>) attributes {dimension_semantics = [#tpu.dimension_semantics<parallel>], iteration_bounds = array<i64: 1>, scalar_prefetch = 0 : i64, scratch_operands = 0 : i64, tpu.core_type = #tpu.core_type<tc>, window_params = [{transform_indices = @transform_0, window_bounds = array<i64: 5, 2, 128>}, {transform_indices = @transform_1, window_bounds = array<i64: 8, 2, 128>}, {transform_indices = @transform_2, window_bounds = array<i64: 2, 128>}, {transform_indices = @transform_3, window_bounds = array<i64: 2, 128>}, {transform_indices = @transform_4, window_bounds = array<i64: 2, 128>}, {transform_indices = @transform_5, window_bounds = array<i64: 2, 128>}]} {
    %c0 = arith.constant 0 : index
    %c0_0 = arith.constant 0 : index
    %0 = vector.load %arg3[%c0, %c0_0] : memref<2x128xi8, #tpu.memory_space<vmem>>, vector<2x128xi8>
    %1 = arith.extsi %0 : vector<2x128xi8> to vector<2x128xi32>
    %c0_1 = arith.constant 0 : index
    %c0_2 = arith.constant 0 : index
    %2 = vector.load %arg4[%c0_1, %c0_2] : memref<2x128xi8, #tpu.memory_space<vmem>>, vector<2x128xi8>
    %3 = arith.extsi %2 : vector<2x128xi8> to vector<2x128xi32>
    %c0_3 = arith.constant 0 : index
    %c0_4 = arith.constant 0 : index
    %c0_5 = arith.constant 0 : index
    %4 = vector.load %arg1[%c0_3, %c0_4, %c0_5] : memref<5x2x128xf32, #tpu.memory_space<vmem>>, vector<5x2x128xf32>
    %c0_6 = arith.constant 0 : index
    %c0_7 = arith.constant 0 : index
    %c0_8 = arith.constant 0 : index
    %5 = vector.load %arg2[%c0_6, %c0_7, %c0_8] : memref<8x2x128xf32, #tpu.memory_space<vmem>>, vector<8x2x128xf32>
    %cst = arith.constant dense<0xFF800000> : vector<2x128xf32>
    %6 = vector.multi_reduction <maximumf>, %4, %cst [0] : vector<5x2x128xf32> to vector<2x128xf32>
    %7 = vector.shape_cast %6 : vector<2x128xf32> to vector<1x2x128xf32>
    %8 = vector.broadcast %7 : vector<1x2x128xf32> to vector<5x2x128xf32>
    %9 = arith.subf %4, %8 : vector<5x2x128xf32>
    %10 = math.exp %9 : vector<5x2x128xf32>
    %cst_9 = arith.constant dense<0.000000e+00> : vector<2x128xf32>
    %11 = vector.multi_reduction <add>, %10, %cst_9 [0] : vector<5x2x128xf32> to vector<2x128xf32>
    %12 = tpu.iota {dimensions = array<i32: 0>} : vector<5x2x128xi32>
    %13 = vector.shape_cast %1 : vector<2x128xi32> to vector<1x2x128xi32>
    %14 = vector.broadcast %13 : vector<1x2x128xi32> to vector<5x2x128xi32>
    %15 = arith.cmpi eq, %12, %14 : vector<5x2x128xi32>
    %cst_10 = arith.constant 0.000000e+00 : f32
    %16 = vector.broadcast %cst_10 : f32 to vector<5x2x128xf32>
    %17 = arith.select %15, %9, %16 : vector<5x2x128xi1>, vector<5x2x128xf32>
    %cst_11 = arith.constant dense<0.000000e+00> : vector<2x128xf32>
    %18 = vector.multi_reduction <add>, %17, %cst_11 [0] : vector<5x2x128xf32> to vector<2x128xf32>
    %19 = math.log %11 : vector<2x128xf32>
    %20 = arith.subf %19, %18 : vector<2x128xf32>
    %cst_12 = arith.constant 0.000000e+00 : f32
    %21 = vector.broadcast %cst_12 : f32 to vector<2x128xf32>
    %22 = arith.subf %21, %20 : vector<2x128xf32>
    %23 = math.exp %22 : vector<2x128xf32>
    %cst_13 = arith.constant 1.000000e+00 : f32
    %24 = vector.broadcast %cst_13 : f32 to vector<2x128xf32>
    %25 = arith.subf %24, %23 : vector<2x128xf32>
    %26 = arith.mulf %25, %25 : vector<2x128xf32>
    %cst_14 = arith.constant 1.000000e+00 : f32
    %27 = vector.broadcast %cst_14 : f32 to vector<2x128xf32>
    %28 = arith.mulf %27, %26 : vector<2x128xf32>
    %29 = arith.mulf %28, %20 : vector<2x128xf32>
    %cst_15 = arith.constant dense<0xFF800000> : vector<2x128xf32>
    %30 = vector.multi_reduction <maximumf>, %5, %cst_15 [0] : vector<8x2x128xf32> to vector<2x128xf32>
    %31 = vector.shape_cast %30 : vector<2x128xf32> to vector<1x2x128xf32>
    %32 = vector.broadcast %31 : vector<1x2x128xf32> to vector<8x2x128xf32>
    %33 = arith.subf %5, %32 : vector<8x2x128xf32>
    %34 = math.exp %33 : vector<8x2x128xf32>
    %cst_16 = arith.constant dense<0.000000e+00> : vector<2x128xf32>
    %35 = vector.multi_reduction <add>, %34, %cst_16 [0] : vector<8x2x128xf32> to vector<2x128xf32>
    %36 = tpu.iota {dimensions = array<i32: 0>} : vector<8x2x128xi32>
    %37 = vector.shape_cast %3 : vector<2x128xi32> to vector<1x2x128xi32>
    %38 = vector.broadcast %37 : vector<1x2x128xi32> to vector<8x2x128xi32>
    %39 = arith.cmpi eq, %36, %38 : vector<8x2x128xi32>
    %cst_17 = arith.constant 0.000000e+00 : f32
    %40 = vector.broadcast %cst_17 : f32 to vector<8x2x128xf32>
    %41 = arith.select %39, %33, %40 : vector<8x2x128xi1>, vector<8x2x128xf32>
    %cst_18 = arith.constant dense<0.000000e+00> : vector<2x128xf32>
    %42 = vector.multi_reduction <add>, %41, %cst_18 [0] : vector<8x2x128xf32> to vector<2x128xf32>
    %43 = math.log %35 : vector<2x128xf32>
    %44 = arith.subf %43, %42 : vector<2x128xf32>
    %cst_19 = arith.constant 0.000000e+00 : f32
    %45 = vector.broadcast %cst_19 : f32 to vector<2x128xf32>
    %46 = arith.subf %45, %44 : vector<2x128xf32>
    %47 = math.exp %46 : vector<2x128xf32>
    %cst_20 = arith.constant 1.000000e+00 : f32
    %48 = vector.broadcast %cst_20 : f32 to vector<2x128xf32>
    %49 = arith.subf %48, %47 : vector<2x128xf32>
    %50 = arith.mulf %49, %49 : vector<2x128xf32>
    %cst_21 = arith.constant 1.000000e+00 : f32
    %51 = vector.broadcast %cst_21 : f32 to vector<2x128xf32>
    %52 = arith.mulf %51, %50 : vector<2x128xf32>
    %53 = arith.mulf %52, %44 : vector<2x128xf32>
    %c2_i32 = arith.constant 2 : i32
    %54 = vector.broadcast %c2_i32 : i32 to vector<2x128xi32>
    %55 = arith.cmpi eq, %1, %54 : vector<2x128xi32>
    %c4_i32 = arith.constant 4 : i32
    %56 = vector.broadcast %c4_i32 : i32 to vector<2x128xi32>
    %57 = arith.cmpi eq, %1, %56 : vector<2x128xi32>
    %58 = arith.ori %55, %57 : vector<2x128xi1>
    %cst_22 = arith.constant 1.59207249 : f32
    %59 = vector.broadcast %cst_22 : f32 to vector<2x128xf32>
    %60 = arith.select %58, %53, %59 : vector<2x128xi1>, vector<2x128xf32>
    %c0_23 = arith.constant 0 : index
    %c0_24 = arith.constant 0 : index
    %61 = vector.load %arg5[%c0_23, %c0_24] : memref<2x128xf32, #tpu.memory_space<vmem>>, vector<2x128xf32>
    tpu.vector_store %arg5[%c0_23, %c0_24], %29 {strides = array<i32>} : memref<2x128xf32, #tpu.memory_space<vmem>>, vector<2x128xf32>,
    %c0_25 = arith.constant 0 : index
    %c0_26 = arith.constant 0 : index
    %62 = vector.load %arg6[%c0_25, %c0_26] : memref<2x128xf32, #tpu.memory_space<vmem>>, vector<2x128xf32>
    tpu.vector_store %arg6[%c0_25, %c0_26], %60 {strides = array<i32>} : memref<2x128xf32, #tpu.memory_space<vmem>>, vector<2x128xf32>,
    return
  }
  func.func @transform_0(%arg0: i32) -> (i32, i32, i32) {
    %c0_i32 = arith.constant 0 : i32
    %c0_i32_0 = arith.constant 0 : i32
    %c0_i32_1 = arith.constant 0 : i32
    return %c0_i32, %arg0, %c0_i32_0 : i32, i32, i32
  }
  func.func @transform_1(%arg0: i32) -> (i32, i32, i32) {
    %c0_i32 = arith.constant 0 : i32
    %c0_i32_0 = arith.constant 0 : i32
    %c0_i32_1 = arith.constant 0 : i32
    return %c0_i32, %arg0, %c0_i32_0 : i32, i32, i32
  }
  func.func @transform_2(%arg0: i32) -> (i32, i32) {
    %c0_i32 = arith.constant 0 : i32
    %c0_i32_0 = arith.constant 0 : i32
    return %arg0, %c0_i32 : i32, i32
  }
  func.func @transform_3(%arg0: i32) -> (i32, i32) {
    %c0_i32 = arith.constant 0 : i32
    %c0_i32_0 = arith.constant 0 : i32
    return %arg0, %c0_i32 : i32, i32
  }
  func.func @transform_4(%arg0: i32) -> (i32, i32) {
    %c0_i32 = arith.constant 0 : i32
    %c0_i32_0 = arith.constant 0 : i32
    return %arg0, %c0_i32 : i32, i32
  }
  func.func @transform_5(%arg0: i32) -> (i32, i32) {
    %c0_i32 = arith.constant 0 : i32
    %c0_i32_0 = arith.constant 0 : i32
    return %arg0, %c0_i32 : i32, i32
  }
}

</mosaic_0001>

<llo_original>
// kernel: tpu_custom_call.1
$region0: #{tpu_custom_call.1}
  #allocation0 [shape = 'u32[]', space=smem, size = 0x4, offset = 0x4, fixed_abs, tag = 'smem constant byte address 0x4 - core index']
  #allocation1 [shape = 'u32[72,128]{1,0:T(1,128)}', space=vmem, size = 0x9000, scoped, tag = 'internal scratch']
  %s0 = inlined_call_operand.hbm [shape: f32[5,2,128], index: 0, kind: input, shape index: {}]
  %s1 = inlined_call_operand.hbm [shape: f32[8,2,128], index: 1, kind: input, shape index: {}]
  %s2 = inlined_call_operand.vmem [shape: s8[2,128], index: 2, kind: input, shape index: {}]
  %s3 = inlined_call_operand.vmem [shape: s8[2,128], index: 3, kind: input, shape index: {}]
  %s4 = inlined_call_operand.hbm [shape: f32[2,128], index: 4, kind: output, shape index: {0}]
  %s5 = inlined_call_operand.hbm [shape: f32[2,128], index: 5, kind: output, shape index: {1}]
  %6 = xla_tuple %s4, %s5
  %s7 = sld [smem:[#allocation0]]
  $region42: #{tpu_custom_call.1} parent=0
    _
  %s9 = ssub.s32 1, %s7
  %s10 = scalar_select 0, %s9, %s7
  $region1: #{tpu_custom_call.1} parent=0
    #allocation2 [shape = 'u8[5120]{0}', space=vmem, size = 0x1400, scoped, tag = 'input window, operand 0, single buffered']
    #allocation3 [shape = 's32[1]{0}', space=sflag, size = 0x4, scoped, tag = 'scoped memory for tpu_custom_call.1']
    #allocation4 [shape = 's32[1]{0}', space=sflag, size = 0x4, scoped, tag = 'scoped memory for tpu_custom_call.1']
    #allocation5 [shape = 'u8[8192]{0}', space=vmem, size = 0x2000, scoped, tag = 'input window, operand 1, single buffered']
    #allocation6 [shape = 's32[1]{0}', space=sflag, size = 0x4, scoped, tag = 'scoped memory for tpu_custom_call.1']
    #allocation7 [shape = 'u8[1024]{0}', space=vmem, size = 0x400, scoped, tag = 'output window, operand 0, single buffered']
    #allocation8 [shape = 'u8[1024]{0}', space=vmem, size = 0x400, scoped, tag = 'output window, operand 1, single buffered']
    #allocation9 [shape = 's32[1]{0}', space=sflag, size = 0x4, scoped, tag = 'scoped memory for tpu_custom_call.1']
    %11 = vsyncpa [#allocation3], 0
    %12 = vsyncpa [#allocation6], 0
    %13 = vsyncpa [#allocation4], 0
    %14 = vsyncpa [#allocation9], 0
    // Predicated region
    $region2: #{tpu_custom_call.1} parent=1 // pred_check
      _
    $region3: #{tpu_custom_call.1} parent=1 // pred_check_branch
      %16 = sbr.rel (0) target = $region5
    $region4: #{tpu_custom_call.1} parent=1 // pred_region
      %18 = vsyncadd [#allocation3], 0
      %s19 = sshll.u32 %s0, 4
      %s20 = int_to_ptr.hbm [resolvable:$true] %s19
      %s21 = sshll.u32 [#allocation2], 4
      %s22 = int_to_ptr.vmem [resolvable:$true] %s21
      %27 = dma.hbm_to_vmem [thread:$0]  %s20, 160, %s22, [#allocation3], 32, 32, 2
    $region5: #{tpu_custom_call.1} parent=1 // pred_fallthru
      _
    // Predicated region
    $region6: #{tpu_custom_call.1} parent=1 // pred_check
      _
    $region7: #{tpu_custom_call.1} parent=1 // pred_check_branch
      %29 = sbr.rel (0) target = $region9
    $region8: #{tpu_custom_call.1} parent=1 // pred_region
      %31 = vsyncadd [#allocation6], 0
      %s32 = sshll.u32 %s1, 4
      %s33 = int_to_ptr.hbm [resolvable:$true] %s32
      %s34 = sshll.u32 [#allocation5], 4
      %s35 = int_to_ptr.vmem [resolvable:$true] %s34
      %40 = dma.hbm_to_vmem [thread:$0]  %s33, 256, %s35, [#allocation6], 32, 32, 2
    $region9: #{tpu_custom_call.1} parent=1 // pred_fallthru
      _
    // Predicated region
    $region10: #{tpu_custom_call.1} parent=1 // pred_check
      _
    $region11: #{tpu_custom_call.1} parent=1 // pred_check_branch
      %42 = sbr.rel (0) target = $region13
    $region12: #{tpu_custom_call.1} parent=1 // pred_region
      _
    $region13: #{tpu_custom_call.1} parent=1 // pred_fallthru
      _
    // Predicated region
    $region14: #{tpu_custom_call.1} parent=1 // pred_check
      _
    $region15: #{tpu_custom_call.1} parent=1 // pred_check_branch
      %44 = sbr.rel (0) target = $region17
    $region16: #{tpu_custom_call.1} parent=1 // pred_region
      _
    $region17: #{tpu_custom_call.1} parent=1 // pred_fallthru
      _
    // Predicated region
    $region18: #{tpu_custom_call.1} parent=1 // pred_check
      _
    $region19: #{tpu_custom_call.1} parent=1 // pred_check_branch
      %46 = sbr.rel (0) target = $region21
    $region20: #{tpu_custom_call.1} parent=1 // pred_region
      %48 = dma.done [#allocation3], 160
    $region21: #{tpu_custom_call.1} parent=1 // pred_fallthru
      _
    // Predicated region
    $region22: #{tpu_custom_call.1} parent=1 // pred_check
      _
    $region23: #{tpu_custom_call.1} parent=1 // pred_check_branch
      %50 = sbr.rel (0) target = $region25
    $region24: #{tpu_custom_call.1} parent=1 // pred_region
      %52 = dma.done [#allocation6], 256
    $region25: #{tpu_custom_call.1} parent=1 // pred_fallthru
      _
    %v53 = vld [vmem:[%s2] sm:$0x1]
    %v54 = vunpack.c.0.s8 %v53
    %v55 = vld [vmem:[%s3] sm:$0x1]
    %v56 = vunpack.c.0.s8 %v55
    %v57 = vld [vmem:[#allocation2] sm:$0x3]
    %v58 = vld [vmem:[#allocation2 + $0x2] sm:$0x3]
    %v59 = vld [vmem:[#allocation2 + $0x4] sm:$0x3]
    %v60 = vld [vmem:[#allocation2 + $0x6] sm:$0x3]
    %v61 = vld [vmem:[#allocation2 + $0x8] sm:$0x3]
    %v62 = vld [vmem:[#allocation5] sm:$0x3]
    %v63 = vld [vmem:[#allocation5 + $0x2] sm:$0x3]
    %v64 = vld [vmem:[#allocation5 + $0x4] sm:$0x3]
    %v65 = vld [vmem:[#allocation5 + $0x6] sm:$0x3]
    %v66 = vld [vmem:[#allocation5 + $0x8] sm:$0x3]
    %v67 = vld [vmem:[#allocation5 + $0xa] sm:$0x3]
    %v68 = vld [vmem:[#allocation5 + $0xc] sm:$0x3]
    %v69 = vld [vmem:[#allocation5 + $0xe] sm:$0x3]
    %vm70 = vcmask 1041408
    %v71 = vsel %vm70, %v57, -inf
    %v72 = vsel %vm70, %v58, -inf
    %v73 = vsel %vm70, %v59, -inf
    %v74 = vsel %vm70, %v60, -inf
    %v75 = vsel %vm70, %v61, -inf
    %v76 = vmax.f32 %v71, %v75
    %v77 = vmax.f32 %v76, %v72
    %v78 = vmax.f32 %v73, %v74
    %v79 = vmax.f32 %v77, %v78
    %v80 = vsub.f32 %v57, %v79
    %v81 = vsub.f32 %v58, %v79
    %v82 = vsub.f32 %v59, %v79
    %v83 = vsub.f32 %v60, %v79
    %v84 = vsub.f32 %v61, %v79
    %v85 = vmul.f32 %v80, 1.442695
    %v86 = vpow.pop %v85
    %v87 = vmul.f32 %v81, 1.442695
    %v88 = vpow.pop %v87
    %v89 = vmul.f32 %v82, 1.442695
    %v90 = vpow.pop %v89
    %v91 = vmul.f32 %v83, 1.442695
    %v92 = vpow.pop %v91
    %v93 = vmul.f32 %v84, 1.442695
    %v94 = vpow.pop %v93
    %v95 = vsel %vm70, %v86, 0.0
    %v96 = vsel %vm70, %v88, 0.0
    %v97 = vadd.f32 %v95, %v96
    %v98 = vsel %vm70, %v90, 0.0
    %v99 = vadd.f32 %v97, %v98
    %v100 = vsel %vm70, %v92, 0.0
    %v101 = vadd.f32 %v99, %v100
    %v102 = vsel %vm70, %v94, 0.0
    %v103 = vadd.f32 %v101, %v102
    %vm104 = vcmp.eq.s32.totalorder %v54, 0
    %vm105 = vcmp.eq.s32.totalorder %v54, 1
    %vm106 = vcmp.eq.s32.totalorder %v54, 2
    %vm107 = vcmp.eq.s32.totalorder %v54, 3
    %vm108 = vcmp.eq.s32.totalorder %v54, 4
    %v109 = vsel %vm104, %v80, 0.0
    %v110 = vsel %vm105, %v81, 0.0
    %v111 = vsel %vm106, %v82, 0.0
    %v112 = vsel %vm107, %v83, 0.0
    %v113 = vsel %vm108, %v84, 0.0
    %v114 = vsel %vm70, %v109, 0.0
    %v115 = vsel %vm70, %v110, 0.0
    %v116 = vadd.f32 %v114, %v115
    %v117 = vsel %vm70, %v111, 0.0
    %v118 = vadd.f32 %v116, %v117
    %v119 = vsel %vm70, %v112, 0.0
    %v120 = vadd.f32 %v118, %v119
    %v121 = vsel %vm70, %v113, 0.0
    %v122 = vadd.f32 %v120, %v121
    %v123 = vlog2.pop %v103
    %v124 = vmul.f32 %v123, 0.6931472
    %v125 = vsub.f32 %v124, %v122
    %v126 = vsub.f32 0.0, %v125
    %v127 = vmul.f32 %v126, 1.442695
    %v128 = vpow.pop %v127
    %v129 = vsub.f32 1.0, %v128
    %v130 = vmul.f32 %v129, %v129
    %v131 = vmul.f32 %v130, %v125
    %v132 = vsel %vm70, %v62, -inf
    %v133 = vsel %vm70, %v63, -inf
    %v134 = vsel %vm70, %v64, -inf
    %v135 = vsel %vm70, %v65, -inf
    %v136 = vsel %vm70, %v66, -inf
    %v137 = vmax.f32 %v132, %v136
    %v138 = vsel %vm70, %v67, -inf
    %v139 = vmax.f32 %v133, %v138
    %v140 = vsel %vm70, %v68, -inf
    %v141 = vmax.f32 %v134, %v140
    %v142 = vsel %vm70, %v69, -inf
    %v143 = vmax.f32 %v135, %v142
    %v144 = vmax.f32 %v137, %v139
    %v145 = vmax.f32 %v141, %v143
    %v146 = vmax.f32 %v144, %v145
    %v147 = vsub.f32 %v62, %v146
    %v148 = vsub.f32 %v63, %v146
    %v149 = vsub.f32 %v64, %v146
    %v150 = vsub.f32 %v65, %v146
    %v151 = vsub.f32 %v66, %v146
    %v152 = vsub.f32 %v67, %v146
    %v153 = vsub.f32 %v68, %v146
    %v154 = vsub.f32 %v69, %v146
    %v155 = vmul.f32 %v147, 1.442695
    %v156 = vpow.pop %v155
    %v157 = vmul.f32 %v148, 1.442695
    %v158 = vpow.pop %v157
    %v159 = vmul.f32 %v149, 1.442695
    %v160 = vpow.pop %v159
    %v161 = vmul.f32 %v150, 1.442695
    %v162 = vpow.pop %v161
    %v163 = vmul.f32 %v151, 1.442695
    %v164 = vpow.pop %v163
    %v165 = vmul.f32 %v152, 1.442695
    %v166 = vpow.pop %v165
    %v167 = vmul.f32 %v153, 1.442695
    %v168 = vpow.pop %v167
    %v169 = vmul.f32 %v154, 1.442695
    %v170 = vpow.pop %v169
    %v171 = vsel %vm70, %v156, 0.0
    %v172 = vsel %vm70, %v158, 0.0
    %v173 = vadd.f32 %v171, %v172
    %v174 = vsel %vm70, %v160, 0.0
    %v175 = vadd.f32 %v173, %v174
    %v176 = vsel %vm70, %v162, 0.0
    %v177 = vadd.f32 %v175, %v176
    %v178 = vsel %vm70, %v164, 0.0
    %v179 = vadd.f32 %v177, %v178
    %v180 = vsel %vm70, %v166, 0.0
    %v181 = vadd.f32 %v179, %v180
    %v182 = vsel %vm70, %v168, 0.0
    %v183 = vadd.f32 %v181, %v182
    %v184 = vsel %vm70, %v170, 0.0
    %v185 = vadd.f32 %v183, %v184
    %vm186 = vcmp.eq.s32.totalorder %v56, 0
    %vm187 = vcmp.eq.s32.totalorder %v56, 1
    %vm188 = vcmp.eq.s32.totalorder %v56, 2
    %vm189 = vcmp.eq.s32.totalorder %v56, 3
    %vm190 = vcmp.eq.s32.totalorder %v56, 4
    %vm191 = vcmp.eq.s32.totalorder %v56, 5
    %vm192 = vcmp.eq.s32.totalorder %v56, 6
    %vm193 = vcmp.eq.s32.totalorder %v56, 7
    %v194 = vsel %vm186, %v147, 0.0
    %v195 = vsel %vm187, %v148, 0.0
    %v196 = vsel %vm188, %v149, 0.0
    %v197 = vsel %vm189, %v150, 0.0
    %v198 = vsel %vm190, %v151, 0.0
    %v199 = vsel %vm191, %v152, 0.0
    %v200 = vsel %vm192, %v153, 0.0
    %v201 = vsel %vm193, %v154, 0.0
    %v202 = vsel %vm70, %v194, 0.0
    %v203 = vsel %vm70, %v195, 0.0
    %v204 = vadd.f32 %v202, %v203
    %v205 = vsel %vm70, %v196, 0.0
    %v206 = vadd.f32 %v204, %v205
    %v207 = vsel %vm70, %v197, 0.0
    %v208 = vadd.f32 %v206, %v207
    %v209 = vsel %vm70, %v198, 0.0
    %v210 = vadd.f32 %v208, %v209
    %v211 = vsel %vm70, %v199, 0.0
    %v212 = vadd.f32 %v210, %v211
    %v213 = vsel %vm70, %v200, 0.0
    %v214 = vadd.f32 %v212, %v213
    %v215 = vsel %vm70, %v201, 0.0
    %v216 = vadd.f32 %v214, %v215
    %v217 = vlog2.pop %v185
    %v218 = vmul.f32 %v217, 0.6931472
    %v219 = vsub.f32 %v218, %v216
    %v220 = vsub.f32 0.0, %v219
    %v221 = vmul.f32 %v220, 1.442695
    %v222 = vpow.pop %v221
    %v223 = vsub.f32 1.0, %v222
    %v224 = vmul.f32 %v223, %v223
    %v225 = vmul.f32 %v224, %v219
    %vm226 = vmor %vm106, %vm108
    %v227 = vsel %vm226, %v225, 1.5920725
    %228 = vst [vmem:[#allocation7] sm:$0x3] %v131
    %229 = vst [vmem:[#allocation8] sm:$0x3] %v227
    // Predicated region
    $region26: #{tpu_custom_call.1} parent=1 // pred_check
      _
    $region27: #{tpu_custom_call.1} parent=1 // pred_check_branch
      %231 = sbr.rel (0) target = $region29
    $region28: #{tpu_custom_call.1} parent=1 // pred_region
      %233 = vsyncadd [#allocation4], 0
      %s235 = sshll.u32 [#allocation7], 4
      %s236 = int_to_ptr.vmem [resolvable:$true] %s235
      %s237 = sshll.u32 %s4, 4
      %s238 = int_to_ptr.hbm [resolvable:$true] %s237
      %240 = dma.vmem_to_hbm [thread:$0]  %s236, 32, %s238, [#allocation4]
    $region29: #{tpu_custom_call.1} parent=1 // pred_fallthru
      _
    // Predicated region
    $region30: #{tpu_custom_call.1} parent=1 // pred_check
      _
    $region31: #{tpu_custom_call.1} parent=1 // pred_check_branch
      %242 = sbr.rel (0) target = $region33
    $region32: #{tpu_custom_call.1} parent=1 // pred_region
      %244 = vsyncadd [#allocation9], 0
      %s246 = sshll.u32 [#allocation8], 4
      %s247 = int_to_ptr.vmem [resolvable:$true] %s246
      %s248 = sshll.u32 %s5, 4
      %s249 = int_to_ptr.hbm [resolvable:$true] %s248
      %251 = dma.vmem_to_hbm [thread:$0]  %s247, 32, %s249, [#allocation9]
    $region33: #{tpu_custom_call.1} parent=1 // pred_fallthru
      _
    // Predicated region
    $region34: #{tpu_custom_call.1} parent=1 // pred_check
      _
    $region35: #{tpu_custom_call.1} parent=1 // pred_check_branch
      %253 = sbr.rel (0) target = $region37
    $region36: #{tpu_custom_call.1} parent=1 // pred_region
      %255 = dma.done [#allocation4], 32
    $region37: #{tpu_custom_call.1} parent=1 // pred_fallthru
      _
    // Predicated region
    $region38: #{tpu_custom_call.1} parent=1 // pred_check
      _
    $region39: #{tpu_custom_call.1} parent=1 // pred_check_branch
      %257 = sbr.rel (0) target = $region41
    $region40: #{tpu_custom_call.1} parent=1 // pred_region
      %259 = dma.done [#allocation9], 32
    $region41: #{tpu_custom_call.1} parent=1 // pred_fallthru
      _
    %260 = vsyncpa [#allocation3], 1
    %261 = vsyncpa [#allocation6], 1
    %262 = vsyncpa [#allocation4], 1
    %263 = vsyncpa [#allocation9], 1

</llo_original>
